<compile_context>
chip_gen: v7x
topology: tpu7x:2x2x1
jax: 0.10.0
libtpu: 0.0.40
codegen_flags: <defaults>
</compile_context>

<pallas_src>
from typing import NamedTuple

import jax
import jax.numpy as jnp
from jax.experimental import pallas as pl
from jax.experimental.pallas import tpu as pltpu


def _round_up(x, m):
    return ((x + m - 1) // m) * m


class _DeviceCfg(NamedTuple):
    vmem_cap: int        # max vmem_limit_bytes we will request
    tile_m_cap: int      # max rows per tile
    w_resident_cap: int  # max bytes for the double-buffered weight block
    multi_core: bool     # megacore (2 TCs per chip)


def _device_config():
    try:
        kind = jax.devices()[0].device_kind.lower()
    except Exception:
        kind = ""
    if "v7" in kind:
        # 64 MiB VMEM per TensorCore, 2 TCs/chip -> keep plenty of headroom
        # and make sure the parallel M axis has work for both cores.
        return _DeviceCfg(vmem_cap=36 << 20, tile_m_cap=512,
                          w_resident_cap=10 << 20, multi_core=True)
    # v5e / v6e (and unknown): 128 MiB physical VMEM, single TensorCore.
    return _DeviceCfg(vmem_cap=64 << 20, tile_m_cap=1024,
                      w_resident_cap=20 << 20, multi_core=False)


class _Plan(NamedTuple):
    n_in: int
    n_out: int
    K_pad: int
    N_pad: int
    tile_k: int
    tile_n: int
    k_tiled: bool
    cfg: _DeviceCfg


def _plan(n_in, n_out, cfg, force_k_tiled=False):
    # Lane-dense N tiling: full (padded) width when it is <= 512 lanes,
    # otherwise 512-wide tiles (multiple of 256 -> fills the 2x256 MXUs on
    # v6e/v7x, and is a multiple of 128 for v5e).
    n_out_128 = _round_up(n_out, 128)
    tile_n = n_out_128 if n_out_128 <= 512 else 512
    N_pad = _round_up(n_out, tile_n)

    K128 = _round_up(n_in, 128)
    # Weight-stationary fast path: double-buffered bf16 W block fits its
    # per-generation VMEM share -> no K grid axis.
    w_resident_bytes = 2 * K128 * tile_n * 2
    if not force_k_tiled and w_resident_bytes <= cfg.w_resident_cap:
        tile_k, K_pad, k_tiled = K128, K128, False
    else:
        tile_k = 128 if force_k_tiled else 512
        K_pad = _round_up(n_in, tile_k)
        k_tiled = True

    return _Plan(n_in, n_out, K_pad, N_pad, tile_k, tile_n, k_tiled, cfg)


def prepare_mlp_params(w, b, force_k_tiled=False):
    """Pad + cast nn.Linear parameters once (hoisted out of the per-call path).

    w: [n_out, n_in] (PyTorch layout), b: [n_out].
    Returns (w_p [K_pad, N_pad] bf16, b_p [1, N_pad] f32, plan).
    """
    n_out, n_in = w.shape
    cfg = _device_config()
    plan = _plan(n_in, n_out, cfg, force_k_tiled)
    w_p = jnp.pad(jnp.asarray(w).T,
                  ((0, plan.K_pad - n_in), (0, plan.N_pad - n_out))
                  ).astype(jnp.bfloat16)
    b_p = jnp.pad(jnp.asarray(b), (0, plan.N_pad - n_out)
                  ).astype(jnp.float32).reshape(1, plan.N_pad)
    return w_p, b_p, plan


# ---------------- kernels ----------------------------------------------------

def _kernel_resident(x_ref, w_ref, b_ref, o_ref):
    # Single K step: no accumulator scratch, no extra acc write/read.
    acc = jnp.dot(x_ref[...].astype(jnp.bfloat16), w_ref[...],
                  preferred_element_type=jnp.float32)
    acc = acc + b_ref[...]
    # LeakyReLU(0.1) as a single vmax.
    o_ref[...] = jnp.maximum(acc, 0.1 * acc).astype(o_ref.dtype)


def _kernel_ktiled(x_ref, w_ref, b_ref, o_ref, acc_ref):
    k = pl.program_id(2)

    @pl.when(k == 0)
    def _():
        # Seed the accumulator with the bias -> no per-K-step broadcast add.
        acc_ref[...] = jnp.broadcast_to(b_ref[...], acc_ref.shape)

    acc_ref[...] += jnp.dot(x_ref[...].astype(jnp.bfloat16), w_ref[...],
                            preferred_element_type=jnp.float32)

    @pl.when(k == pl.num_programs(2) - 1)
    def _():
        acc = acc_ref[...]
        o_ref[...] = jnp.maximum(acc, 0.1 * acc).astype(o_ref.dtype)


# ---------------- wrapper -----------------------------------------------------

def mlp_forward(x, w_p, b_p, plan):
    """y = leaky_relu(x @ W^T + b, 0.1) for x of shape [..., n_in]."""
    # TODO(synk): train-mode dropout (p > 0) via pltpu.prng_random_bits; the
    # module default p=0 / eval-mode dropout is the identity, so it is a no-op.
    cfg = plan.cfg
    n_in, n_out = plan.n_in, plan.n_out
    assert x.shape[-1] == n_in
    lead = x.shape[:-1]
    x2 = x.reshape(-1, n_in)
    M = x2.shape[0]
    out_dtype = x.dtype
    x_isize = jnp.dtype(x.dtype).itemsize
    o_isize = jnp.dtype(out_dtype).itemsize

    # ---- budget-first tile_m derivation -------------------------------------
    block_budget = cfg.vmem_cap - (4 << 20)           # compiler-scratch headroom
    fixed = 2 * (plan.tile_k * plan.tile_n * 2 + 8 * plan.tile_n * 4)  # W + bias
    per_row = 2 * (plan.tile_k * x_isize + plan.tile_n * o_isize)      # x + out
    if plan.k_tiled:
        per_row += plan.tile_n * 4                    # f32 accumulator scratch
    tile_m = max(16, ((block_budget - fixed) // per_row) // 16 * 16)
    tile_m = min(tile_m, cfg.tile_m_cap, _round_up(M, 16))

    # v7x megacore occupancy: make sure the "parallel" M axis has >= 2 tiles.
    if cfg.multi_core and _round_up(M, 16) >= 32:
        if _round_up(M, tile_m) // tile_m < 2:
            tile_m = _round_up(_round_up(M, 16) // 2, 16)

    M_pad = _round_up(M, tile_m)
    if M_pad == M and plan.K_pad == n_in:
        x_p = x2                                       # no wrapper copy needed
    else:
        x_p = jnp.pad(x2, ((0, M_pad - M), (0, plan.K_pad - n_in)))

    footprint = fixed + tile_m * per_row
    vmem_limit = int(min(cfg.vmem_cap, max(16 << 20, footprint + (4 << 20))))

    if not plan.k_tiled:
        # Weight-stationary: grid (N, M) with M fastest -> the W block index
        # (0, j) is constant across the inner M loop, so W is fetched once per
        # N tile and stays resident in VMEM.
        grid = (plan.N_pad // plan.tile_n, M_pad // tile_m)
        out_p = pl.pallas_call(
            _kernel_resident,
            out_shape=jax.ShapeDtypeStruct((M_pad, plan.N_pad), out_dtype),
            grid_spec=pltpu.PrefetchScalarGridSpec(
                num_scalar_prefetch=0,
                grid=grid,
                in_specs=[
                    pl.BlockSpec((tile_m, plan.tile_k), lambda j, i: (i, 0)),
                    pl.BlockSpec((plan.tile_k, plan.tile_n),
                                 lambda j, i: (0, j)),
                    pl.BlockSpec((1, plan.tile_n), lambda j, i: (0, j)),
                ],
                out_specs=pl.BlockSpec((tile_m, plan.tile_n),
                                       lambda j, i: (i, j)),
            ),
            compiler_params=pltpu.CompilerParams(
                dimension_semantics=("parallel", "parallel"),
                vmem_limit_bytes=vmem_limit,
            ),
        )(x_p, w_p, b_p)
    else:
        grid = (M_pad // tile_m, plan.N_pad // plan.tile_n,
                plan.K_pad // plan.tile_k)
        out_p = pl.pallas_call(
            _kernel_ktiled,
            out_shape=jax.ShapeDtypeStruct((M_pad, plan.N_pad), out_dtype),
            grid_spec=pltpu.PrefetchScalarGridSpec(
                num_scalar_prefetch=0,
                grid=grid,
                in_specs=[
                    pl.BlockSpec((tile_m, plan.tile_k),
                                 lambda i, j, k: (i, k)),
                    pl.BlockSpec((plan.tile_k, plan.tile_n),
                                 lambda i, j, k: (k, j)),
                    pl.BlockSpec((1, plan.tile_n), lambda i, j, k: (0, j)),
                ],
                out_specs=pl.BlockSpec((tile_m, plan.tile_n),
                                       lambda i, j, k: (i, j)),
                scratch_shapes=[pltpu.VMEM((tile_m, plan.tile_n), jnp.float32)],
            ),
            compiler_params=pltpu.CompilerParams(
                dimension_semantics=("parallel", "parallel", "arbitrary"),
                vmem_limit_bytes=vmem_limit,
            ),
        )(x_p, w_p, b_p)

    return out_p[:M, :n_out].reshape(*lead, n_out)


# ---------------- demo / self-test -------------------------------------------

if __name__ == "__main__":
    key = jax.random.PRNGKey(0)

    def run_case(M, n_in, n_out, kx, kw, kb, force_k_tiled=False):
        # Deterministic param init mimicking nn.Linear (uniform +-1/sqrt(n_in)).
        bound = 1.0 / (n_in ** 0.5)
        w = jax.random.uniform(kw, (n_out, n_in), jnp.float32, -bound, bound)
        b = jax.random.uniform(kb, (n_out,), jnp.float32, -bound, bound)
        x = jax.random.normal(kx, (M, n_in), jnp.float32)

        w_p, b_p, plan = prepare_mlp_params(w, b, force_k_tiled=force_k_tiled)
        out = jax.block_until_ready(mlp_forward(x, w_p, b_p, plan))
        assert out.shape == (M, n_out)
        assert out.dtype == x.dtype

        # Reference with the same bf16-operand / f32-accumulate math.
        ref = jnp.dot(x.astype(jnp.bfloat16), w.T.astype(jnp.bfloat16),
                      preferred_element_type=jnp.float32) + b[None, :]
        ref = jnp.maximum(ref, 0.1 * ref)
        err = float(jnp.abs(out - ref).max())
        assert jnp.allclose(out, ref, atol=1e-4, rtol=1e-4), err

        # Loose sanity check vs full-f32 math (bf16 operand quantization only).
        ref32 = x @ w.T + b[None, :]
        ref32 = jnp.maximum(ref32, 0.1 * ref32)
        assert jnp.allclose(out, ref32, atol=5e-2, rtol=5e-2)

    ks = jax.random.split(key, 6)
    # Small shapes consistent with MLP(n_in, n_out): weight-resident fast path.
    run_case(8, 32, 64, ks[0], ks[1], ks[2])
    # Unaligned dims + 2 K steps: exercises padding and the K-tiled
    # accumulator path.
    run_case(40, 200, 192, ks[3], ks[4], ks[5], force_k_tiled=True)

    print("KERNEL_OK")
</pallas_src>

<mosaic_0001>
module attributes {stable_mosaic.version = 11 : i64} {
  func.func @_kernel_resident(%arg0: i32, %arg1: i32, %arg2: memref<16x128xf32, #tpu.memory_space<vmem>>, %arg3: memref<128x128xbf16, #tpu.memory_space<vmem>>, %arg4: memref<1x128xf32, #tpu.memory_space<vmem>>, %arg5: memref<16x128xf32, #tpu.memory_space<vmem>>) attributes {dimension_semantics = [#tpu.dimension_semantics<parallel>, #tpu.dimension_semantics<parallel>], iteration_bounds = array<i64: 1, 1>, scalar_prefetch = 0 : i64, scratch_operands = 0 : i64, tpu.core_type = #tpu.core_type<tc>, window_params = [{transform_indices = @transform_0, window_bounds = array<i64: 16, 128>}, {transform_indices = @transform_1, window_bounds = array<i64: 128, 128>}, {transform_indices = @transform_2, window_bounds = array<i64: 1, 128>}, {transform_indices = @transform_3, window_bounds = array<i64: 16, 128>}]} {
    %c0 = arith.constant 0 : index
    %c0_0 = arith.constant 0 : index
    %0 = vector.load %arg2[%c0, %c0_0] : memref<16x128xf32, #tpu.memory_space<vmem>>, vector<16x128xf32>
    %1 = arith.truncf %0 : vector<16x128xf32> to vector<16x128xbf16>
    %c0_1 = arith.constant 0 : index
    %c0_2 = arith.constant 0 : index
    %2 = vector.load %arg3[%c0_1, %c0_2] : memref<128x128xbf16, #tpu.memory_space<vmem>>, vector<128x128xbf16>
    %cst = arith.constant dense<0.000000e+00> : vector<16x128xf32>
    %3 = tpu.matmul %1, %2, %cst {dimension_numbers = #tpu.dot_dimension_numbers<[1], [0], [0], [1], [0, 0, 1, 1], [], []>} : vector<16x128xbf16>, vector<128x128xbf16>, vector<16x128xf32> -> vector<16x128xf32>
    %c0_3 = arith.constant 0 : index
    %c0_4 = arith.constant 0 : index
    %4 = vector.load %arg4[%c0_3, %c0_4] : memref<1x128xf32, #tpu.memory_space<vmem>>, vector<1x128xf32>
    %5 = vector.broadcast %4 : vector<1x128xf32> to vector<16x128xf32>
    %6 = arith.addf %3, %5 : vector<16x128xf32>
    %cst_5 = arith.constant 1.000000e-01 : f32
    %7 = vector.broadcast %cst_5 : f32 to vector<16x128xf32>
    %8 = arith.mulf %7, %6 : vector<16x128xf32>
    %9 = arith.maximumf %6, %8 : vector<16x128xf32>
    %c0_6 = arith.constant 0 : index
    %c0_7 = arith.constant 0 : index
    %10 = vector.load %arg5[%c0_6, %c0_7] : memref<16x128xf32, #tpu.memory_space<vmem>>, vector<16x128xf32>
    tpu.vector_store %arg5[%c0_6, %c0_7], %9 {strides = array<i32>} : memref<16x128xf32, #tpu.memory_space<vmem>>, vector<16x128xf32>,
    return
  }
  func.func @transform_0(%arg0: i32, %arg1: i32) -> (i32, i32) {
    %c0_i32 = arith.constant 0 : i32
    %c0_i32_0 = arith.constant 0 : i32
    return %arg1, %c0_i32 : i32, i32
  }
  func.func @transform_1(%arg0: i32, %arg1: i32) -> (i32, i32) {
    %c0_i32 = arith.constant 0 : i32
    %c0_i32_0 = arith.constant 0 : i32
    return %c0_i32, %arg0 : i32, i32
  }
  func.func @transform_2(%arg0: i32, %arg1: i32) -> (i32, i32) {
    %c0_i32 = arith.constant 0 : i32
    %c0_i32_0 = arith.constant 0 : i32
    return %c0_i32, %arg0 : i32, i32
  }
  func.func @transform_3(%arg0: i32, %arg1: i32) -> (i32, i32) {
    %c0_i32 = arith.constant 0 : i32
    return %arg1, %arg0 : i32, i32
  }
}

</mosaic_0001>

<llo_original>
// kernel: tpu_custom_call.1
$region0: #{tpu_custom_call.1}
  #allocation0 [shape = 'u32[]', space=smem, size = 0x4, offset = 0x4, fixed_abs, tag = 'smem constant byte address 0x4 - core index']
  #allocation1 [shape = 'u32[144,128]{1,0:T(1,128)}', space=vmem, size = 0x12000, scoped, tag = 'internal scratch']
  %s0 = inlined_call_operand.hbm [shape: f32[16,128], index: 0, kind: input, shape index: {}]
  %s1 = inlined_call_operand.hbm [shape: bf16[128,128], index: 1, kind: input, shape index: {}]
  %s2 = inlined_call_operand.vmem [shape: f32[1,128], index: 2, kind: input, shape index: {}]
  %s3 = inlined_call_operand.hbm [shape: f32[16,128], index: 3, kind: output, shape index: {}]
  %s4 = sld [smem:[#allocation0]]
  $region30: #{tpu_custom_call.1} parent=0
    _
  %s6 = ssub.s32 1, %s4
  %s7 = scalar_select 0, %s6, %s4
  $region1: #{tpu_custom_call.1} parent=0
    #allocation2 [shape = 'u8[8192]{0}', space=vmem, size = 0x2000, scoped, tag = 'input window, operand 0, single buffered']
    #allocation3 [shape = 's32[1]{0}', space=sflag, size = 0x4, scoped, tag = 'scoped memory for tpu_custom_call.1']
    #allocation4 [shape = 's32[1]{0}', space=sflag, size = 0x4, scoped, tag = 'scoped memory for tpu_custom_call.1']
    #allocation5 [shape = 'u8[32768]{0}', space=vmem, size = 0x8000, scoped, tag = 'input window, operand 1, single buffered']
    #allocation6 [shape = 's32[1]{0}', space=sflag, size = 0x4, scoped, tag = 'scoped memory for tpu_custom_call.1']
    #allocation7 [shape = 'u8[8192]{0}', space=vmem, size = 0x2000, scoped, tag = 'output window, operand 0, single buffered']
    %8 = vsyncpa [#allocation3], 0
    %9 = vsyncpa [#allocation6], 0
    %10 = vsyncpa [#allocation4], 0
    // Predicated region
    $region2: #{tpu_custom_call.1} parent=1 // pred_check
      _
    $region3: #{tpu_custom_call.1} parent=1 // pred_check_branch
      %12 = sbr.rel (0) target = $region5
    $region4: #{tpu_custom_call.1} parent=1 // pred_region
      %s14 = ssub.s32 256, 256
      %15 = vsyncadd [#allocation3], %s14
      %s16 = sshll.u32 [#allocation2], 4
      %s17 = int_to_ptr.vmem [resolvable:$true] %s16
      %22 = dma.hbm_to_vmem [thread:$0]  %s0, 256, %s17, [#allocation3], 128, 128, 8
    $region5: #{tpu_custom_call.1} parent=1 // pred_fallthru
      _
    // Predicated region
    $region6: #{tpu_custom_call.1} parent=1 // pred_check
      _
    $region7: #{tpu_custom_call.1} parent=1 // pred_check_branch
      %24 = sbr.rel (0) target = $region9
    $region8: #{tpu_custom_call.1} parent=1 // pred_region
      %s26 = ssub.s32 1024, 1024
      %27 = vsyncadd [#allocation6], %s26
      %s28 = sshll.u32 [#allocation5], 4
      %s29 = int_to_ptr.vmem [resolvable:$true] %s28
      %34 = dma.hbm_to_vmem [thread:$0]  %s1, 1024, %s29, [#allocation6], 64, 64, 4
    $region9: #{tpu_custom_call.1} parent=1 // pred_fallthru
      _
    // Predicated region
    $region10: #{tpu_custom_call.1} parent=1 // pred_check
      _
    $region11: #{tpu_custom_call.1} parent=1 // pred_check_branch
      %36 = sbr.rel (0) target = $region13
    $region12: #{tpu_custom_call.1} parent=1 // pred_region
      _
    $region13: #{tpu_custom_call.1} parent=1 // pred_fallthru
      _
    // Predicated region
    $region14: #{tpu_custom_call.1} parent=1 // pred_check
      _
    $region15: #{tpu_custom_call.1} parent=1 // pred_check_branch
      %38 = sbr.rel (0) target = $region17
    $region16: #{tpu_custom_call.1} parent=1 // pred_region
      %39 = dma.done [#allocation3], 256
    $region17: #{tpu_custom_call.1} parent=1 // pred_fallthru
      _
    // Predicated region
    $region18: #{tpu_custom_call.1} parent=1 // pred_check
      _
    $region19: #{tpu_custom_call.1} parent=1 // pred_check_branch
      %41 = sbr.rel (0) target = $region21
    $region20: #{tpu_custom_call.1} parent=1 // pred_region
      %42 = dma.done [#allocation6], 1024
    $region21: #{tpu_custom_call.1} parent=1 // pred_fallthru
      _
    %v44 = vld [vmem:[#allocation2] sm:$0xff]
    %v45 = vld [vmem:[#allocation2 + $0x8] sm:$0xff]
    %v46 = vpack.c.bf16 %v45, %v44
    %v47 = vld [vmem:[#allocation5] sm:$0xf]
    %v48 = vld [vmem:[#allocation5 + $0x4] sm:$0xf]
    %v49 = vld [vmem:[#allocation5 + $0x8] sm:$0xf]
    %v50 = vld [vmem:[#allocation5 + $0xc] sm:$0xf]
    %v51 = vld [vmem:[#allocation5 + $0x10] sm:$0xf]
    %v52 = vld [vmem:[#allocation5 + $0x14] sm:$0xf]
    %v53 = vld [vmem:[#allocation5 + $0x18] sm:$0xf]
    %v54 = vld [vmem:[#allocation5 + $0x1c] sm:$0xf]
    %v55 = vld [vmem:[#allocation5 + $0x20] sm:$0xf]
    %v56 = vld [vmem:[#allocation5 + $0x24] sm:$0xf]
    %v57 = vld [vmem:[#allocation5 + $0x28] sm:$0xf]
    %v58 = vld [vmem:[#allocation5 + $0x2c] sm:$0xf]
    %v59 = vld [vmem:[#allocation5 + $0x30] sm:$0xf]
    %v60 = vld [vmem:[#allocation5 + $0x34] sm:$0xf]
    %v61 = vld [vmem:[#allocation5 + $0x38] sm:$0xf]
    %v62 = vld [vmem:[#allocation5 + $0x3c] sm:$0xf]
    %v63 = vld [vmem:[%s2] sm:$0x1]
    %v65 = vlaneseq
    %v66 = vshrl.u32 %v65, 7
    %v67 = vsub.s32 0, %v66
    %v68 = vrot.slane %v63, %v67
    %v86 = vunpack.c.l.b16 %v47
    %v87 = vunpack.c.l.b16 %v48
    %v88 = vunpack.c.l.b16 %v49
    %v89 = vunpack.c.l.b16 %v50
    %v90 = vunpack.c.l.b16 %v51
    %v91 = vunpack.c.l.b16 %v52
    %v92 = vunpack.c.l.b16 %v53
    %v93 = vunpack.c.l.b16 %v54
    %v94 = vunpack.c.l.b16 %v55
    %v95 = vunpack.c.l.b16 %v56
    %v96 = vunpack.c.l.b16 %v57
    %v97 = vunpack.c.l.b16 %v58
    %v98 = vunpack.c.l.b16 %v59
    %v99 = vunpack.c.l.b16 %v60
    %v100 = vunpack.c.l.b16 %v61
    %v101 = vunpack.c.l.b16 %v62
    %v102 = vpack.c.b16 %v87, %v86
    %v103 = vpack.c.b16 %v89, %v88
    %v104 = vpack.c.b16 %v91, %v90
    %v105 = vpack.c.b16 %v93, %v92
    %v106 = vpack.c.b16 %v95, %v94
    %v107 = vpack.c.b16 %v97, %v96
    %v108 = vpack.c.b16 %v99, %v98
    %v109 = vpack.c.b16 %v101, %v100
    %118 = vmatprep.subr.bf16.mxu0 0
    %119 = vmatpush1.bf16.msra.mxu0 %v102
    %120 = vmatprep.subr.bf16.mxu0 0
    %121 = vmatpush1.bf16.msra.mxu0 %v103
    %122 = vmatprep.subr.bf16.mxu0 0
    %123 = vmatpush1.bf16.msra.mxu0 %v104
    %124 = vmatprep.subr.bf16.mxu0 0
    %125 = vmatpush1.bf16.msra.mxu0 %v105
    %126 = vmatprep.subr.bf16.mxu0 0
    %127 = vmatpush1.bf16.msra.mxu0 %v106
    %128 = vmatprep.subr.bf16.mxu0 0
    %129 = vmatpush1.bf16.msra.mxu0 %v107
    %130 = vmatprep.subr.bf16.mxu0 0
    %131 = vmatpush1.bf16.msra.mxu0 %v108
    %132 = vmatprep.subr.bf16.mxu0 0
    %133 = vmatpush1.bf16.msra.mxu0 %v109
    %134 = vmatprep.subr.bf16.mxu0 0
    %135 = vmatpush1.bf16.msra.mxu0 0
    %136 = vmatprep.subr.bf16.mxu0 0
    %137 = vmatpush1.bf16.msra.mxu0 0
    %138 = vmatprep.subr.bf16.mxu0 0
    %139 = vmatpush1.bf16.msra.mxu0 0
    %140 = vmatprep.subr.bf16.mxu0 0
    %141 = vmatpush1.bf16.msra.mxu0 0
    %142 = vmatprep.subr.bf16.mxu0 0
    %143 = vmatpush1.bf16.msra.mxu0 0
    %144 = vmatprep.subr.bf16.mxu0 0
    %145 = vmatpush1.bf16.msra.mxu0 0
    %146 = vmatprep.subr.bf16.mxu0 0
    %147 = vmatpush1.bf16.msra.mxu0 0
    %148 = vmatprep.subr.bf16.mxu0 0
    %149 = vmatpush1.bf16.msra.mxu0 0
    %150 = vmatprep.mubr.bf16.mxu0 0
    %151 = vmatmul.mubr.bf16.gmra.mrb[0].mxu0 %v46
    %v152 = vpop.f32.mrb[0].mxu0
    %v153 = vadd.f32 %v68, %v152
    %v154 = vpop.f32.mrb[0].mxu0
    %v155 = vpop.f32.mrb[0].mxu0
    %v156 = vadd.f32 %v68, %v155
    %v157 = vpop.f32.mrb[0].mxu0
    %158 = vdwg.mxu0
    %v159 = vmul.f32 %v153, 0.1
    %v160 = vmul.f32 %v156, 0.1
    %v161 = vmax.f32 %v153, %v159
    %v162 = vmax.f32 %v156, %v160
    %163 = vst [vmem:[#allocation7] sm:$0xff] %v161
    %164 = vst [vmem:[#allocation7 + $0x8] sm:$0xff] %v162
    // Predicated region
    $region22: #{tpu_custom_call.1} parent=1 // pred_check
      _
    $region23: #{tpu_custom_call.1} parent=1 // pred_check_branch
      %166 = sbr.rel (0) target = $region25
    $region24: #{tpu_custom_call.1} parent=1 // pred_region
      %s168 = ssub.s32 256, 256
      %169 = vsyncadd [#allocation4], %s168
      %s170 = sshll.u32 [#allocation7], 4
      %s171 = int_to_ptr.vmem [resolvable:$true] %s170
      %176 = dma.vmem_to_hbm [thread:$0]  %s171, 256, %s3, [#allocation4], 128, 128, 8
    $region25: #{tpu_custom_call.1} parent=1 // pred_fallthru
      _
    // Predicated region
    $region26: #{tpu_custom_call.1} parent=1 // pred_check
      _
    $region27: #{tpu_custom_call.1} parent=1 // pred_check_branch
      %178 = sbr.rel (0) target = $region29
    $region28: #{tpu_custom_call.1} parent=1 // pred_region
      %179 = dma.done [#allocation4], 256
    $region29: #{tpu_custom_call.1} parent=1 // pred_fallthru
      _
    %180 = vsyncpa [#allocation3], 1
    %181 = vsyncpa [#allocation6], 1
    %182 = vsyncpa [#allocation4], 1

</llo_original>
